<compile_context>
chip_gen: v7x
topology: tpu7x:2x2x1
jax: 0.10.0
libtpu: 0.0.40
codegen_flags: <defaults>
</compile_context>

<pallas_src>
import functools

import jax
import jax.numpy as jnp
from jax.experimental import pallas as pl
from jax.experimental.pallas import tpu as pltpu

NEG_BIG = -9e15  # matches torch's -9000000000000000.0 (reference only)


def _round_up(x, m):
    return (x + m - 1) // m * m


def _vmem_capacity_bytes():
    try:
        return int(pltpu.get_tpu_info().vmem_capacity_bytes)
    except Exception:
        return 64 * 2 ** 20  # conservative (v7x per-TC) fallback


# --------------------------------------------------------------------------
# Flash-style attention kernel: online masked softmax + aggregation.
# grid = (row_tiles, col_tiles); col axis is the reduction ("arbitrary").
# --------------------------------------------------------------------------
def _attn_kernel(adj_ref, erow_ref, scol_ref, whv_ref, o_ref,
                 m_sc, l_sc, acc_sc, *, alpha, concat):
    k = pl.program_id(1)

    @pl.when(k == 0)
    def _():
        m_sc[...] = jnp.full(m_sc.shape, -jnp.inf, dtype=m_sc.dtype)
        l_sc[...] = jnp.zeros(l_sc.shape, dtype=l_sc.dtype)
        acc_sc[...] = jnp.zeros(acc_sc.shape, dtype=acc_sc.dtype)

    # e[i, j] = LeakyReLU((Wh@a1)[i] + (Wh@a2)[j])   -- f32 scores
    e = erow_ref[...] + scol_ref[...]                 # (T,1)+(1,Tk) -> (T,Tk)
    e = jnp.where(e > 0, e, alpha * e)                # LeakyReLU(alpha)

    # Online softmax update. Row max is taken over unmasked e (exact after
    # normalization); adjacency + padding mask is ONE post-exp multiply.
    m_prev = m_sc[...]
    m_new = jnp.maximum(m_prev, jnp.max(e, axis=1, keepdims=True))
    p = jnp.exp(e - m_new) * adj_ref[...].astype(jnp.float32)
    corr = jnp.exp(m_prev - m_new)
    l_sc[...] = corr * l_sc[...] + jnp.sum(p, axis=1, keepdims=True)

    # TODO(synk): F.dropout(attention, training=True) not implemented.

    # Unnormalized aggregation: bf16 MXU operands, f32 accumulation.
    acc_sc[...] = corr * acc_sc[...] + jnp.dot(
        p.astype(whv_ref.dtype), whv_ref[...],
        preferred_element_type=jnp.float32)
    m_sc[...] = m_new

    @pl.when(k == pl.num_programs(1) - 1)
    def _():
        # Deferred normalization on the narrow (T, fp) accumulator only.
        denom = jnp.maximum(l_sc[...], 1e-30)           # guard isolated rows
        hp = acc_sc[...] * pl.reciprocal(denom, approx=True)
        if concat:
            # ELU(alpha=1); clamp exp arg so large positives never hit inf.
            hp = jnp.where(hp > 0, hp, jnp.exp(jnp.minimum(hp, 0.0)) - 1.0)
        o_ref[...] = hp.astype(o_ref.dtype)


# --------------------------------------------------------------------------
# Wrapper
# --------------------------------------------------------------------------
def gat_forward(h, adj, W, a, *, alpha=0.2, concat=True):
    """Pallas GAT layer forward (eval mode).

    h   : (N, in_features)  float32
    adj : (N, N)            float32 (>0 means edge)
    W   : (in_features, out_features)
    a   : (2*out_features, 1)
    """
    N, _ = h.shape
    fout = W.shape[1]
    f32, bf16 = jnp.float32, jnp.bfloat16

    # ---- projection + score vectors: one tiny f32 GEMM left to XLA ---------
    wh = jnp.dot(h.astype(f32), W.astype(f32),
                 precision=jax.lax.Precision.HIGHEST)            # (N, fout)
    a1 = a[:fout, :].astype(f32)
    a2 = a[fout:, :].astype(f32)
    e_row = jnp.dot(wh, a1, precision=jax.lax.Precision.HIGHEST)  # (N, 1)
    s_col = jnp.dot(wh, a2, precision=jax.lax.Precision.HIGHEST).T  # (1, N)

    # ---- generation-aware tiling --------------------------------------------
    vmem_cap = _vmem_capacity_bytes()
    tile_n_target = 256 if vmem_cap >= 100 * 2 ** 20 else 128  # v5e/v6e vs v7x
    tile_n = tile_n_target if N >= tile_n_target else _round_up(N, 32)
    npad = _round_up(N, tile_n)
    if npad <= 512:
        tile_k = npad
    elif npad % 512 == 0:
        tile_k = 512
    elif npad % 256 == 0:
        tile_k = 256
    else:
        tile_k = 128          # npad is always a multiple of 128 here
    fp = _round_up(fout, 128)  # lane-dense output / Wh columns
    grid = (npad // tile_n, npad // tile_k)
    row_tiles = npad // tile_n

    # ---- padded operands -----------------------------------------------------
    adj_i8 = jnp.zeros((npad, npad), jnp.int8).at[:N, :N].set(
        (adj > 0).astype(jnp.int8))                       # int8 halves adj DMA
    wh_p = jnp.zeros((npad, fp), f32).at[:N, :fout].set(wh).astype(bf16)
    e_row_p = jnp.zeros((npad, 1), f32).at[:N, :].set(e_row)
    # padded columns get a large negative score so they never win the row max
    s_col_p = jnp.full((1, npad), -1e9, f32).at[:, :N].set(s_col)

    # ---- VMEM budget ---------------------------------------------------------
    vmem_est = (2 * tile_n * tile_k * 1          # adj block, dbl-buffered (i8)
                + 2 * tile_k * fp * 2            # Wh col block, dbl-buffered
                + 2 * tile_n * fp * 4            # output tile, dbl-buffered
                + 2 * (tile_k + tile_n) * 4 * 8  # scol / erow (padded)
                + tile_n * fp * 4 + 2 * tile_n * 4   # scratch acc / m / l
                + 6 * tile_n * tile_k * 4)       # f32 intermediates headroom
    vmem_limit = int(min(max(2 * vmem_est, 32 * 2 ** 20), vmem_cap * 3 // 4))

    attn_cost = pl.CostEstimate(
        flops=int(2 * npad * npad * fp + 10 * npad * npad),
        transcendentals=int(npad * npad + 2 * npad * row_tiles + npad * fp),
        bytes_accessed=int(npad * npad * 1
                           + row_tiles * npad * fp * 2
                           + npad * fp * 4
                           + npad * 8))

    attn = functools.partial(_attn_kernel, alpha=float(alpha),
                             concat=bool(concat))

    out_pad = pl.pallas_call(
        attn,
        out_shape=jax.ShapeDtypeStruct((npad, fp), f32),
        grid=grid,
        in_specs=[
            pl.BlockSpec((tile_n, tile_k), lambda i, k: (i, k)),  # adj block
            pl.BlockSpec((tile_n, 1), lambda i, k: (i, 0)),       # row scores
            pl.BlockSpec((1, tile_k), lambda i, k: (0, k)),       # col scores
            pl.BlockSpec((tile_k, fp), lambda i, k: (k, 0)),      # Wh col block
        ],
        out_specs=pl.BlockSpec((tile_n, fp), lambda i, k: (i, 0)),
        scratch_shapes=[pltpu.VMEM((tile_n, 1), f32),   # running max
                        pltpu.VMEM((tile_n, 1), f32),   # running denom
                        pltpu.VMEM((tile_n, fp), f32)], # accumulator
        compiler_params=pltpu.CompilerParams(
            dimension_semantics=("parallel", "arbitrary"),
            vmem_limit_bytes=vmem_limit),
        cost_estimate=attn_cost,
    )(adj_i8, e_row_p, s_col_p, wh_p)

    return out_pad[:N, :fout]


# --------------------------------------------------------------------------
# Test harness
# --------------------------------------------------------------------------
def _xavier_uniform(key, shape, gain):
    fan_in, fan_out = shape
    bound = gain * jnp.sqrt(6.0 / (fan_in + fan_out))
    return jax.random.uniform(key, shape, jnp.float32, -bound, bound)


def _reference(h, adj, W, a, alpha, concat):
    # pure-JAX f32 reference mirroring the PyTorch forward (eval mode)
    wh = h @ W
    fout = W.shape[1]
    e = wh @ a[:fout, 0:1] + (wh @ a[fout:, 0:1]).T
    e = jnp.where(e > 0, e, alpha * e)
    att = jnp.where(adj > 0, e, NEG_BIG)
    att = jax.nn.softmax(att, axis=1)
    hp = att @ wh
    return jax.nn.elu(hp) if concat else hp


if __name__ == "__main__":
    key = jax.random.PRNGKey(0)

    def run_case(case_key, N, fin, fout, concat):
        k_h, k_adj, k_w, k_a = jax.random.split(case_key, 4)
        h = jax.random.normal(k_h, (N, fin), dtype=jnp.float32)
        adj = (jax.random.uniform(k_adj, (N, N)) > 0.5).astype(jnp.float32)
        adj = adj + jnp.eye(N, dtype=jnp.float32)   # self-loops
        W = _xavier_uniform(k_w, (fin, fout), gain=1.414)
        a = _xavier_uniform(k_a, (2 * fout, 1), gain=1.414)
        alpha = 0.2

        out = gat_forward(h, adj, W, a, alpha=alpha, concat=concat)
        out = jax.block_until_ready(out)

        ref = _reference(h, adj, W, a, alpha, concat)
        assert out.shape == (N, fout)
        # bf16 MXU operands (f32 accumulate) -> loose tolerance vs f32 reference
        err = jnp.max(jnp.abs(out - ref))
        assert jnp.allclose(out, ref, atol=5e-2, rtol=5e-2), \
            f"mismatch, max abs err={err}"

    k1, k2, k3 = jax.random.split(key, 3)
    run_case(k1, N=8, fin=16, fout=32, concat=True)      # single-tile path
    run_case(k2, N=200, fin=24, fout=40, concat=False)   # padding / row tiles
    run_case(k3, N=600, fin=32, fout=64, concat=True)    # multi row+col tiles
                                                         # (online softmax)
    print("KERNEL_OK")
</pallas_src>

<mosaic_0001>
module attributes {stable_mosaic.version = 11 : i64} {
  func.func @_attn_kernel(%arg0: i32, %arg1: i32, %arg2: memref<32x32xi8, #tpu.memory_space<vmem>>, %arg3: memref<32x1xf32, #tpu.memory_space<vmem>>, %arg4: memref<1x32xf32, #tpu.memory_space<vmem>>, %arg5: memref<32x128xbf16, #tpu.memory_space<vmem>>, %arg6: memref<32x128xf32, #tpu.memory_space<vmem>>, %arg7: memref<32x1xf32, #tpu.memory_space<vmem>>, %arg8: memref<32x1xf32, #tpu.memory_space<vmem>>, %arg9: memref<32x128xf32, #tpu.memory_space<vmem>>) attributes {dimension_semantics = [#tpu.dimension_semantics<parallel>, #tpu.dimension_semantics<arbitrary>], iteration_bounds = array<i64: 1, 1>, scalar_prefetch = 0 : i64, scratch_operands = 3 : i64, tpu.core_type = #tpu.core_type<tc>, window_params = [{transform_indices = @transform_0, window_bounds = array<i64: 32, 32>}, {transform_indices = @transform_1, window_bounds = array<i64: 32, 1>}, {transform_indices = @transform_2, window_bounds = array<i64: 1, 32>}, {transform_indices = @transform_3, window_bounds = array<i64: 32, 128>}, {transform_indices = @transform_4, window_bounds = array<i64: 32, 128>}]} {
    %c0_i32 = arith.constant 0 : i32
    %0 = arith.cmpi eq, %arg1, %c0_i32 : i32
    %1 = arith.extui %0 : i1 to i32
    %c0_i32_0 = arith.constant 0 : i32
    %2 = arith.cmpi ne, %1, %c0_i32_0 : i32
    scf.if %2 {
      %cst_26 = arith.constant 0xFF800000 : f32
      %43 = vector.broadcast %cst_26 : f32 to vector<32x1xf32>
      %c0_27 = arith.constant 0 : index
      %c0_28 = arith.constant 0 : index
      %44 = vector.load %arg7[%c0_27, %c0_28] : memref<32x1xf32, #tpu.memory_space<vmem>>, vector<32x1xf32>
      tpu.vector_store %arg7[%c0_27, %c0_28], %43 {strides = array<i32>} : memref<32x1xf32, #tpu.memory_space<vmem>>, vector<32x1xf32>,
      %cst_29 = arith.constant 0.000000e+00 : f32
      %45 = vector.broadcast %cst_29 : f32 to vector<32x1xf32>
      %c0_30 = arith.constant 0 : index
      %c0_31 = arith.constant 0 : index
      %46 = vector.load %arg8[%c0_30, %c0_31] : memref<32x1xf32, #tpu.memory_space<vmem>>, vector<32x1xf32>
      tpu.vector_store %arg8[%c0_30, %c0_31], %45 {strides = array<i32>} : memref<32x1xf32, #tpu.memory_space<vmem>>, vector<32x1xf32>,
      %cst_32 = arith.constant 0.000000e+00 : f32
      %47 = vector.broadcast %cst_32 : f32 to vector<32x128xf32>
      %c0_33 = arith.constant 0 : index
      %c0_34 = arith.constant 0 : index
      %48 = vector.load %arg9[%c0_33, %c0_34] : memref<32x128xf32, #tpu.memory_space<vmem>>, vector<32x128xf32>
      tpu.vector_store %arg9[%c0_33, %c0_34], %47 {strides = array<i32>} : memref<32x128xf32, #tpu.memory_space<vmem>>, vector<32x128xf32>,
    } else {
    }
    %c0 = arith.constant 0 : index
    %c0_1 = arith.constant 0 : index
    %3 = vector.load %arg3[%c0, %c0_1] : memref<32x1xf32, #tpu.memory_space<vmem>>, vector<32x1xf32>
    %c0_2 = arith.constant 0 : index
    %c0_3 = arith.constant 0 : index
    %4 = vector.load %arg4[%c0_2, %c0_3] : memref<1x32xf32, #tpu.memory_space<vmem>>, vector<1x32xf32>
    %5 = vector.broadcast %3 : vector<32x1xf32> to vector<32x32xf32>
    %6 = vector.broadcast %4 : vector<1x32xf32> to vector<32x32xf32>
    %7 = arith.addf %5, %6 : vector<32x32xf32>
    %cst = arith.constant 0.000000e+00 : f32
    %8 = vector.broadcast %cst : f32 to vector<32x32xf32>
    %9 = arith.cmpf ogt, %7, %8 : vector<32x32xf32>
    %cst_4 = arith.constant 2.000000e-01 : f32
    %10 = vector.broadcast %cst_4 : f32 to vector<32x32xf32>
    %11 = arith.mulf %10, %7 : vector<32x32xf32>
    %12 = arith.select %9, %7, %11 : vector<32x32xi1>, vector<32x32xf32>
    %c0_5 = arith.constant 0 : index
    %c0_6 = arith.constant 0 : index
    %13 = vector.load %arg7[%c0_5, %c0_6] : memref<32x1xf32, #tpu.memory_space<vmem>>, vector<32x1xf32>
    %cst_7 = arith.constant dense<0xFF800000> : vector<32xf32>
    %14 = vector.multi_reduction <maximumf>, %12, %cst_7 [1] : vector<32x32xf32> to vector<32xf32>
    %15 = vector.shape_cast %14 : vector<32xf32> to vector<32x1xf32>
    %16 = arith.maximumf %13, %15 : vector<32x1xf32>
    %17 = vector.broadcast %16 : vector<32x1xf32> to vector<32x32xf32>
    %18 = arith.subf %12, %17 : vector<32x32xf32>
    %19 = math.exp %18 : vector<32x32xf32>
    %c0_8 = arith.constant 0 : index
    %c0_9 = arith.constant 0 : index
    %20 = vector.load %arg2[%c0_8, %c0_9] : memref<32x32xi8, #tpu.memory_space<vmem>>, vector<32x32xi8>
    %21 = arith.sitofp %20 : vector<32x32xi8> to vector<32x32xf32>
    %22 = arith.mulf %19, %21 : vector<32x32xf32>
    %23 = arith.subf %13, %16 : vector<32x1xf32>
    %24 = math.exp %23 : vector<32x1xf32>
    %c0_10 = arith.constant 0 : index
    %c0_11 = arith.constant 0 : index
    %25 = vector.load %arg8[%c0_10, %c0_11] : memref<32x1xf32, #tpu.memory_space<vmem>>, vector<32x1xf32>
    %26 = arith.mulf %24, %25 : vector<32x1xf32>
    %cst_12 = arith.constant dense<0.000000e+00> : vector<32xf32>
    %27 = vector.multi_reduction <add>, %22, %cst_12 [1] : vector<32x32xf32> to vector<32xf32>
    %28 = vector.shape_cast %27 : vector<32xf32> to vector<32x1xf32>
    %29 = arith.addf %26, %28 : vector<32x1xf32>
    %c0_13 = arith.constant 0 : index
    %c0_14 = arith.constant 0 : index
    %30 = vector.load %arg8[%c0_13, %c0_14] : memref<32x1xf32, #tpu.memory_space<vmem>>, vector<32x1xf32>
    tpu.vector_store %arg8[%c0_13, %c0_14], %29 {strides = array<i32>} : memref<32x1xf32, #tpu.memory_space<vmem>>, vector<32x1xf32>,
    %c0_15 = arith.constant 0 : index
    %c0_16 = arith.constant 0 : index
    %31 = vector.load %arg9[%c0_15, %c0_16] : memref<32x128xf32, #tpu.memory_space<vmem>>, vector<32x128xf32>
    %32 = vector.broadcast %24 : vector<32x1xf32> to vector<32x128xf32>
    %33 = arith.mulf %32, %31 : vector<32x128xf32>
    %34 = arith.truncf %22 : vector<32x32xf32> to vector<32x32xbf16>
    %c0_17 = arith.constant 0 : index
    %c0_18 = arith.constant 0 : index
    %35 = vector.load %arg5[%c0_17, %c0_18] : memref<32x128xbf16, #tpu.memory_space<vmem>>, vector<32x128xbf16>
    %cst_19 = arith.constant dense<0.000000e+00> : vector<32x128xf32>
    %36 = tpu.matmul %34, %35, %cst_19 {dimension_numbers = #tpu.dot_dimension_numbers<[1], [0], [0], [1], [0, 0, 1, 1], [], []>} : vector<32x32xbf16>, vector<32x128xbf16>, vector<32x128xf32> -> vector<32x128xf32>
    %37 = arith.addf %33, %36 : vector<32x128xf32>
    %c0_20 = arith.constant 0 : index
    %c0_21 = arith.constant 0 : index
    %38 = vector.load %arg9[%c0_20, %c0_21] : memref<32x128xf32, #tpu.memory_space<vmem>>, vector<32x128xf32>
    tpu.vector_store %arg9[%c0_20, %c0_21], %37 {strides = array<i32>} : memref<32x128xf32, #tpu.memory_space<vmem>>, vector<32x128xf32>,
    %c0_22 = arith.constant 0 : index
    %c0_23 = arith.constant 0 : index
    %39 = vector.load %arg7[%c0_22, %c0_23] : memref<32x1xf32, #tpu.memory_space<vmem>>, vector<32x1xf32>
    tpu.vector_store %arg7[%c0_22, %c0_23], %16 {strides = array<i32>} : memref<32x1xf32, #tpu.memory_space<vmem>>, vector<32x1xf32>,
    %c0_i32_24 = arith.constant 0 : i32
    %40 = arith.cmpi eq, %arg1, %c0_i32_24 : i32
    %41 = arith.extui %40 : i1 to i32
    %c0_i32_25 = arith.constant 0 : i32
    %42 = arith.cmpi ne, %41, %c0_i32_25 : i32
    scf.if %42 {
      %c0_26 = arith.constant 0 : index
      %c0_27 = arith.constant 0 : index
      %43 = vector.load %arg8[%c0_26, %c0_27] : memref<32x1xf32, #tpu.memory_space<vmem>>, vector<32x1xf32>
      %cst_28 = arith.constant 1.000000e-30 : f32
      %44 = vector.broadcast %cst_28 : f32 to vector<32x1xf32>
      %45 = arith.maximumf %43, %44 : vector<32x1xf32>
      %c0_29 = arith.constant 0 : index
      %c0_30 = arith.constant 0 : index
      %46 = vector.load %arg9[%c0_29, %c0_30] : memref<32x128xf32, #tpu.memory_space<vmem>>, vector<32x128xf32>
      %47 = tpu.reciprocal %45 {approx = true} : vector<32x1xf32> -> vector<32x1xf32>
      %48 = vector.broadcast %47 : vector<32x1xf32> to vector<32x128xf32>
      %49 = arith.mulf %46, %48 : vector<32x128xf32>
      %cst_31 = arith.constant 0.000000e+00 : f32
      %50 = vector.broadcast %cst_31 : f32 to vector<32x128xf32>
      %51 = arith.cmpf ogt, %49, %50 : vector<32x128xf32>
      %cst_32 = arith.constant 0.000000e+00 : f32
      %52 = vector.broadcast %cst_32 : f32 to vector<32x128xf32>
      %53 = arith.minimumf %49, %52 : vector<32x128xf32>
      %54 = math.exp %53 : vector<32x128xf32>
      %cst_33 = arith.constant 1.000000e+00 : f32
      %55 = vector.broadcast %cst_33 : f32 to vector<32x128xf32>
      %56 = arith.subf %54, %55 : vector<32x128xf32>
      %57 = arith.select %51, %49, %56 : vector<32x128xi1>, vector<32x128xf32>
      %c0_34 = arith.constant 0 : index
      %c0_35 = arith.constant 0 : index
      %58 = vector.load %arg6[%c0_34, %c0_35] : memref<32x128xf32, #tpu.memory_space<vmem>>, vector<32x128xf32>
      tpu.vector_store %arg6[%c0_34, %c0_35], %57 {strides = array<i32>} : memref<32x128xf32, #tpu.memory_space<vmem>>, vector<32x128xf32>,
    } else {
    }
    return
  }
  func.func @transform_0(%arg0: i32, %arg1: i32) -> (i32, i32) {
    %c0_i32 = arith.constant 0 : i32
    return %arg0, %arg1 : i32, i32
  }
  func.func @transform_1(%arg0: i32, %arg1: i32) -> (i32, i32) {
    %c0_i32 = arith.constant 0 : i32
    %c0_i32_0 = arith.constant 0 : i32
    return %arg0, %c0_i32 : i32, i32
  }
  func.func @transform_2(%arg0: i32, %arg1: i32) -> (i32, i32) {
    %c0_i32 = arith.constant 0 : i32
    %c0_i32_0 = arith.constant 0 : i32
    return %c0_i32, %arg1 : i32, i32
  }
  func.func @transform_3(%arg0: i32, %arg1: i32) -> (i32, i32) {
    %c0_i32 = arith.constant 0 : i32
    %c0_i32_0 = arith.constant 0 : i32
    return %arg1, %c0_i32 : i32, i32
  }
  func.func @transform_4(%arg0: i32, %arg1: i32) -> (i32, i32) {
    %c0_i32 = arith.constant 0 : i32
    %c0_i32_0 = arith.constant 0 : i32
    return %arg0, %c0_i32 : i32, i32
  }
}

</mosaic_0001>

<llo_original>
// kernel: tpu_custom_call.1
$region0: #{tpu_custom_call.1}
  #allocation0 [shape = 'u32[]', space=smem, size = 0x4, offset = 0x4, fixed_abs, tag = 'smem constant byte address 0x4 - core index']
  #allocation1 [shape = 'u32[144,128]{1,0:T(1,128)}', space=vmem, size = 0x12000, scoped, tag = 'internal scratch']
  #allocation2 [shape = 'f32[32,1]{1,0:T(8,128)}', space=vmem, size = 0x4000, scoped, tag = 'scratch operand']
  #allocation3 [shape = 'f32[32,1]{1,0:T(8,128)}', space=vmem, size = 0x4000, scoped, tag = 'scratch operand']
  #allocation4 [shape = 'f32[32,128]{1,0:T(8,128)}', space=vmem, size = 0x4000, scoped, tag = 'scratch operand']
  %s0 = inlined_call_operand.vmem [shape: s8[32,32], index: 0, kind: input, shape index: {}]
  %s1 = inlined_call_operand.vmem [shape: f32[32,1], index: 1, kind: input, shape index: {}]
  %s2 = inlined_call_operand.vmem [shape: f32[1,32], index: 2, kind: input, shape index: {}]
  %s3 = inlined_call_operand.vmem [shape: bf16[32,128], index: 3, kind: input, shape index: {}]
  %s4 = inlined_call_operand.hbm [shape: f32[32,128], index: 4, kind: output, shape index: {}]
  %s5 = sld [smem:[#allocation0]]
  $region34: #{tpu_custom_call.1} parent=0
    _
  %s7 = ssub.s32 1, %s5
  %s8 = scalar_select 0, %s7, %s5
  $region1: #{tpu_custom_call.1} parent=0
    #allocation5 [shape = 'u8[16384]{0}', space=vmem, size = 0x4000, scoped, tag = 'output window, operand 0, single buffered']
    #allocation6 [shape = 's32[1]{0}', space=sflag, size = 0x4, scoped, tag = 'scoped memory for tpu_custom_call.1']
    %9 = vsyncpa [#allocation6], 0
    // Predicated region
    $region2: #{tpu_custom_call.1} parent=1 // pred_check
      _
    $region3: #{tpu_custom_call.1} parent=1 // pred_check_branch
      %11 = sbr.rel (0) target = $region5
    $region4: #{tpu_custom_call.1} parent=1 // pred_region
      _
    $region5: #{tpu_custom_call.1} parent=1 // pred_fallthru
      _
    // Predicated region
    $region6: #{tpu_custom_call.1} parent=1 // pred_check
      _
    $region7: #{tpu_custom_call.1} parent=1 // pred_check_branch
      %13 = sbr.rel (0) target = $region9
    $region8: #{tpu_custom_call.1} parent=1 // pred_region
      _
    $region9: #{tpu_custom_call.1} parent=1 // pred_fallthru
      _
    // Predicated region
    $region10: #{tpu_custom_call.1} parent=1 // pred_check
      _
    $region11: #{tpu_custom_call.1} parent=1 // pred_check_branch
      %15 = sbr.rel (0) target = $region13
    $region12: #{tpu_custom_call.1} parent=1 // pred_region
      _
    $region13: #{tpu_custom_call.1} parent=1 // pred_fallthru
      _
    // Predicated region
    $region14: #{tpu_custom_call.1} parent=1 // pred_check
      _
    $region15: #{tpu_custom_call.1} parent=1 // pred_check_branch
      %17 = sbr.rel (0) target = $region17
    $region16: #{tpu_custom_call.1} parent=1 // pred_region
      _
    $region17: #{tpu_custom_call.1} parent=1 // pred_fallthru
      _
    %p19 = scmp.eq.s32.totalorder 0, 0
    // Predicated region
    $region18: #{tpu_custom_call.1} parent=1 // pred_check
      %p20 = pneg %p19
    $region19: #{tpu_custom_call.1} parent=1 // pred_check_branch
      %22 = sbr.rel (%p20) target = $region21
    $region20: #{tpu_custom_call.1} parent=1 // pred_region
      %vm23 = vcmask 7168
      %24 = vst.msk [vmem:[#allocation2] sm:$0xff] %vm23, -inf
      %25 = vst.msk [vmem:[#allocation2 + $0x8] sm:$0xff] %vm23, -inf
      %26 = vst.msk [vmem:[#allocation2 + $0x10] sm:$0xff] %vm23, -inf
      %27 = vst.msk [vmem:[#allocation2 + $0x18] sm:$0xff] %vm23, -inf
      %28 = vst.msk [vmem:[#allocation3] sm:$0xff] %vm23, 0.0
      %29 = vst.msk [vmem:[#allocation3 + $0x8] sm:$0xff] %vm23, 0.0
      %30 = vst.msk [vmem:[#allocation3 + $0x10] sm:$0xff] %vm23, 0.0
      %31 = vst.msk [vmem:[#allocation3 + $0x18] sm:$0xff] %vm23, 0.0
      %32 = vst [vmem:[#allocation4] sm:$0xff] 0.0
      %33 = vst [vmem:[#allocation4 + $0x8] sm:$0xff] 0.0
      %34 = vst [vmem:[#allocation4 + $0x10] sm:$0xff] 0.0
      %35 = vst [vmem:[#allocation4 + $0x18] sm:$0xff] 0.0
    $region21: #{tpu_custom_call.1} parent=1 // pred_fallthru
      _
    %v36 = vld [vmem:[%s1] sm:$0xff]
    %v37 = vld [vmem:[%s1 + $0x8] sm:$0xff]
    %v38 = vld [vmem:[%s1 + $0x10] sm:$0xff]
    %v39 = vld [vmem:[%s1 + $0x18] sm:$0xff]
    %v40 = vld [vmem:[%s2] sm:$0x1]
    %42 = vset.pattern.permute.xlu0 0
    %43 = vperm.xlu0 %42, %v36
    %v44 = vpop.permute.xlu0 %43
    %47 = vset.pattern.permute.xlu0 0
    %48 = vperm.xlu0 %47, %v37
    %v49 = vpop.permute.xlu0 %48
    %52 = vset.pattern.permute.xlu0 0
    %53 = vperm.xlu0 %52, %v38
    %v54 = vpop.permute.xlu0 %53
    %57 = vset.pattern.permute.xlu0 0
    %58 = vperm.xlu0 %57, %v39
    %v59 = vpop.permute.xlu0 %58
    %v62 = vlaneseq
    %v63 = vshrl.u32 %v62, 7
    %v64 = vsub.s32 0, %v63
    %v65 = vrot.slane %v40, %v64
    %v67 = vadd.f32 %v44, %v65
    %v68 = vadd.f32 %v49, %v65
    %v69 = vadd.f32 %v54, %v65
    %v70 = vadd.f32 %v59, %v65
    %vm71 = vcmp.gt.f32.partialorder %v67, 0.0
    %vm72 = vcmp.gt.f32.partialorder %v68, 0.0
    %vm73 = vcmp.gt.f32.partialorder %v69, 0.0
    %vm74 = vcmp.gt.f32.partialorder %v70, 0.0
    %v75 = vmul.f32 %v67, 0.2
    %v76 = vmul.f32 %v68, 0.2
    %v77 = vmul.f32 %v69, 0.2
    %v78 = vmul.f32 %v70, 0.2
    %v79 = vsel %vm71, %v67, %v75
    %v80 = vsel %vm72, %v68, %v76
    %v81 = vsel %vm73, %v69, %v77
    %v82 = vsel %vm74, %v70, %v78
    %v83 = vld [vmem:[#allocation2] sm:$0xff]
    %v84 = vld [vmem:[#allocation2 + $0x8] sm:$0xff]
    %v85 = vld [vmem:[#allocation2 + $0x10] sm:$0xff]
    %v86 = vld [vmem:[#allocation2 + $0x18] sm:$0xff]
    %vm87 = vcmask 261120
    %v88 = vsel %vm87, %v79, -inf
    %89 = vmax.xlane.f32.xlu0 %v88
    %v90 = vpop.xlane.xlu0 %89
    %v91 = vsel %vm87, %v80, -inf
    %92 = vmax.xlane.f32.xlu0 %v91
    %v93 = vpop.xlane.xlu0 %92
    %v94 = vsel %vm87, %v81, -inf
    %95 = vmax.xlane.f32.xlu0 %v94
    %v96 = vpop.xlane.xlu0 %95
    %v97 = vsel %vm87, %v82, -inf
    %98 = vmax.xlane.f32.xlu0 %v97
    %v99 = vpop.xlane.xlu0 %98
    %v100 = vmax.f32 %v83, %v90
    %v101 = vmax.f32 %v84, %v93
    %v102 = vmax.f32 %v85, %v96
    %v103 = vmax.f32 %v86, %v99
    %105 = vset.pattern.permute.xlu0 0
    %106 = vperm.xlu0 %105, %v100
    %v107 = vpop.permute.xlu0 %106
    %110 = vset.pattern.permute.xlu0 0
    %111 = vperm.xlu0 %110, %v101
    %v112 = vpop.permute.xlu0 %111
    %115 = vset.pattern.permute.xlu0 0
    %116 = vperm.xlu0 %115, %v102
    %v117 = vpop.permute.xlu0 %116
    %120 = vset.pattern.permute.xlu0 0
    %121 = vperm.xlu0 %120, %v103
    %v122 = vpop.permute.xlu0 %121
    %v124 = vsub.f32 %v79, %v107
    %v125 = vsub.f32 %v80, %v112
    %v126 = vsub.f32 %v81, %v117
    %v127 = vsub.f32 %v82, %v122
    %v128 = vmul.f32 %v124, 1.442695
    %v129 = vpow.pop %v128
    %v130 = vmul.f32 %v125, 1.442695
    %v131 = vpow.pop %v130
    %v132 = vmul.f32 %v126, 1.442695
    %v133 = vpow.pop %v132
    %v134 = vmul.f32 %v127, 1.442695
    %v135 = vpow.pop %v134
    %v136 = vld [vmem:[%s0] sm:$0xff]
    %v137 = vunpack.c.0.s8 %v136
    %v138 = vunpack.c.1.s8 %v136
    %v139 = vunpack.c.2.s8 %v136
    %v140 = vunpack.c.3.s8 %v136
    %v141 = vcvt.s32.f32 %v137
    %v142 = vcvt.s32.f32 %v138
    %v143 = vcvt.s32.f32 %v139
    %v144 = vcvt.s32.f32 %v140
    %v145 = vmul.f32 %v129, %v141
    %v146 = vmul.f32 %v131, %v142
    %v147 = vmul.f32 %v133, %v143
    %v148 = vmul.f32 %v135, %v144
    %v149 = vsub.f32 %v83, %v100
    %v150 = vsub.f32 %v84, %v101
    %v151 = vsub.f32 %v85, %v102
    %v152 = vsub.f32 %v86, %v103
    %v153 = vmul.f32 %v149, 1.442695
    %v154 = vpow.pop %v153
    %v155 = vmul.f32 %v150, 1.442695
    %v156 = vpow.pop %v155
    %v157 = vmul.f32 %v151, 1.442695
    %v158 = vpow.pop %v157
    %v159 = vmul.f32 %v152, 1.442695
    %v160 = vpow.pop %v159
    %v161 = vld [vmem:[#allocation3] sm:$0xff]
    %v162 = vld [vmem:[#allocation3 + $0x8] sm:$0xff]
    %v163 = vld [vmem:[#allocation3 + $0x10] sm:$0xff]
    %v164 = vld [vmem:[#allocation3 + $0x18] sm:$0xff]
    %v165 = vmul.f32 %v154, %v161
    %v166 = vmul.f32 %v156, %v162
    %v167 = vmul.f32 %v158, %v163
    %v168 = vmul.f32 %v160, %v164
    %v169 = vsel %vm87, %v145, 0.0
    %170 = vadd.xlane.f32.xlu0 %v169
    %v171 = vpop.xlane.xlu0 %170
    %v172 = vsel %vm87, %v146, 0.0
    %173 = vadd.xlane.f32.xlu0 %v172
    %v174 = vpop.xlane.xlu0 %173
    %v175 = vsel %vm87, %v147, 0.0
    %176 = vadd.xlane.f32.xlu0 %v175
    %v177 = vpop.xlane.xlu0 %176
    %v178 = vsel %vm87, %v148, 0.0
    %179 = vadd.xlane.f32.xlu0 %v178
    %v180 = vpop.xlane.xlu0 %179
    %v181 = vadd.f32 %v165, %v171
    %v182 = vadd.f32 %v166, %v174
    %v183 = vadd.f32 %v167, %v177
    %v184 = vadd.f32 %v168, %v180
    %vm185 = vcmask 7168
    %186 = vst.msk [vmem:[#allocation3] sm:$0xff] %vm185, %v181
    %187 = vst.msk [vmem:[#allocation3 + $0x8] sm:$0xff] %vm185, %v182
    %188 = vst.msk [vmem:[#allocation3 + $0x10] sm:$0xff] %vm185, %v183
    %189 = vst.msk [vmem:[#allocation3 + $0x18] sm:$0xff] %vm185, %v184
    %v190 = vld [vmem:[#allocation4] sm:$0xff]
    %v191 = vld [vmem:[#allocation4 + $0x8] sm:$0xff]
    %v192 = vld [vmem:[#allocation4 + $0x10] sm:$0xff]
    %v193 = vld [vmem:[#allocation4 + $0x18] sm:$0xff]
    %195 = vset.pattern.permute.xlu0 0
    %196 = vperm.xlu0 %195, %v154
    %v197 = vpop.permute.xlu0 %196
    %200 = vset.pattern.permute.xlu0 0
    %201 = vperm.xlu0 %200, %v156
    %v202 = vpop.permute.xlu0 %201
    %205 = vset.pattern.permute.xlu0 0
    %206 = vperm.xlu0 %205, %v158
    %v207 = vpop.permute.xlu0 %206
    %210 = vset.pattern.permute.xlu0 0
    %211 = vperm.xlu0 %210, %v160
    %v212 = vpop.permute.xlu0 %211
    %v214 = vmul.f32 %v197, %v190
    %v215 = vmul.f32 %v202, %v191
    %v216 = vmul.f32 %v207, %v192
    %v217 = vmul.f32 %v212, %v193
    %v218 = vpack.c.bf16 %v146, %v145
    %v219 = vpack.c.bf16 %v148, %v147
    %v220 = vld [vmem:[%s3] sm:$0xf]
    %v221 = vld [vmem:[%s3 + $0x4] sm:$0xf]
    %v222 = vld [vmem:[%s3 + $0x8] sm:$0xf]
    %v223 = vld [vmem:[%s3 + $0xc] sm:$0xf]
    %v228 = vunpack.c.l.b16 %v220
    %v229 = vunpack.c.l.b16 %v221
    %v230 = vunpack.c.l.b16 %v222
    %v231 = vunpack.c.l.b16 %v223
    %v232 = vpack.c.b16 %v229, %v228
    %v233 = vpack.c.b16 %v231, %v230
    %v237 = vsel %vm87, %v218, 0
    %v240 = vsel %vm87, %v219, 0
    %242 = vmatprep.subr.bf16.mxu0 0
    %243 = vmatpush1.bf16.msra.mxu0 %v232
    %244 = vmatprep.subr.bf16.mxu0 0
    %245 = vmatpush1.bf16.msra.mxu0 %v233
    %246 = vmatprep.subr.bf16.mxu0 0
    %247 = vmatpush1.bf16.msra.mxu0 0
    %248 = vmatprep.subr.bf16.mxu0 0
    %249 = vmatpush1.bf16.msra.mxu0 0
    %250 = vmatprep.subr.bf16.mxu0 0
    %251 = vmatpush1.bf16.msra.mxu0 0
    %252 = vmatprep.subr.bf16.mxu0 0
    %253 = vmatpush1.bf16.msra.mxu0 0
    %254 = vmatprep.subr.bf16.mxu0 0
    %255 = vmatpush1.bf16.msra.mxu0 0
    %256 = vmatprep.subr.bf16.mxu0 0
    %257 = vmatpush1.bf16.msra.mxu0 0
    %258 = vmatprep.subr.bf16.mxu0 0
    %259 = vmatpush1.bf16.msra.mxu0 0
    %260 = vmatprep.subr.bf16.mxu0 0
    %261 = vmatpush1.bf16.msra.mxu0 0
    %262 = vmatprep.subr.bf16.mxu0 0
    %263 = vmatpush1.bf16.msra.mxu0 0
    %264 = vmatprep.subr.bf16.mxu0 0
    %265 = vmatpush1.bf16.msra.mxu0 0
    %266 = vmatprep.subr.bf16.mxu0 0
    %267 = vmatpush1.bf16.msra.mxu0 0
    %268 = vmatprep.subr.bf16.mxu0 0
    %269 = vmatpush1.bf16.msra.mxu0 0
    %270 = vmatprep.subr.bf16.mxu0 0
    %271 = vmatpush1.bf16.msra.mxu0 0
    %272 = vmatprep.subr.bf16.mxu0 0
    %273 = vmatpush1.bf16.msra.mxu0 0
    %274 = vmatprep.mubr.bf16.mxu0 0
    %275 = vmatmul.mubr.bf16.gmra.mrb[0].mxu0 %v237
    %v276 = vpop.f32.mrb[0].mxu0
    %v277 = vadd.f32 0.0, %v276
    %v278 = vpop.f32.mrb[0].mxu0
    %v279 = vpop.f32.mrb[0].mxu0
    %v280 = vadd.f32 0.0, %v279
    %v281 = vpop.f32.mrb[0].mxu0
    %282 = vmatprep.mubr.bf16.mxu0 0
    %283 = vmatmul.mubr.bf16.gmra.mrb[0].mxu0 %v240
    %v284 = vpop.f32.mrb[0].mxu0
    %v285 = vadd.f32 0.0, %v284
    %v286 = vpop.f32.mrb[0].mxu0
    %v287 = vpop.f32.mrb[0].mxu0
    %v288 = vadd.f32 0.0, %v287
    %v289 = vpop.f32.mrb[0].mxu0
    %290 = vdwg.mxu0
    %v291 = vadd.f32 %v214, %v277
    %v292 = vadd.f32 %v215, %v280
    %v293 = vadd.f32 %v216, %v285
    %v294 = vadd.f32 %v217, %v288
    %295 = vst [vmem:[#allocation4] sm:$0xff] %v291
    %296 = vst [vmem:[#allocation4 + $0x8] sm:$0xff] %v292
    %297 = vst [vmem:[#allocation4 + $0x10] sm:$0xff] %v293
    %298 = vst [vmem:[#allocation4 + $0x18] sm:$0xff] %v294
    %299 = vst.msk [vmem:[#allocation2] sm:$0xff] %vm185, %v100
    %300 = vst.msk [vmem:[#allocation2 + $0x8] sm:$0xff] %vm185, %v101
    %301 = vst.msk [vmem:[#allocation2 + $0x10] sm:$0xff] %vm185, %v102
    %302 = vst.msk [vmem:[#allocation2 + $0x18] sm:$0xff] %vm185, %v103
    // Predicated region
    $region22: #{tpu_custom_call.1} parent=1 // pred_check
      %p303 = pneg %p19
    $region23: #{tpu_custom_call.1} parent=1 // pred_check_branch
      %305 = sbr.rel (%p303) target = $region25
    $region24: #{tpu_custom_call.1} parent=1 // pred_region
      %v306 = vld [vmem:[#allocation3] sm:$0xff]
      %v307 = vld [vmem:[#allocation3 + $0x8] sm:$0xff]
      %v308 = vld [vmem:[#allocation3 + $0x10] sm:$0xff]
      %v309 = vld [vmem:[#allocation3 + $0x18] sm:$0xff]
      %v310 = vmax.f32 %v306, 1e-30
      %v311 = vmax.f32 %v307, 1e-30
      %v312 = vmax.f32 %v308, 1e-30
      %v313 = vmax.f32 %v309, 1e-30
      %v314 = vld [vmem:[#allocation4] sm:$0xff]
      %v315 = vld [vmem:[#allocation4 + $0x8] sm:$0xff]
      %v316 = vld [vmem:[#allocation4 + $0x10] sm:$0xff]
      %v317 = vld [vmem:[#allocation4 + $0x18] sm:$0xff]
      %v318 = vrcp.pop %v310
      %v319 = vrcp.pop %v311
      %v320 = vrcp.pop %v312
      %v321 = vrcp.pop %v313
      %323 = vset.pattern.permute.xlu0 0
      %324 = vperm.xlu0 %323, %v318
      %v325 = vpop.permute.xlu0 %324
      %328 = vset.pattern.permute.xlu0 0
      %329 = vperm.xlu0 %328, %v319
      %v330 = vpop.permute.xlu0 %329
      %333 = vset.pattern.permute.xlu0 0
      %334 = vperm.xlu0 %333, %v320
      %v335 = vpop.permute.xlu0 %334
      %338 = vset.pattern.permute.xlu0 0
      %339 = vperm.xlu0 %338, %v321
      %v340 = vpop.permute.xlu0 %339
      %v342 = vmul.f32 %v314, %v325
      %v343 = vmul.f32 %v315, %v330
      %v344 = vmul.f32 %v316, %v335
      %v345 = vmul.f32 %v317, %v340
      %vm346 = vcmp.gt.f32.partialorder %v342, 0.0
      %vm347 = vcmp.gt.f32.partialorder %v343, 0.0
      %vm348 = vcmp.gt.f32.partialorder %v344, 0.0
      %vm349 = vcmp.gt.f32.partialorder %v345, 0.0
      %v350 = vmin.f32 %v342, 0.0
      %v351 = vmin.f32 %v343, 0.0
      %v352 = vmin.f32 %v344, 0.0
      %v353 = vmin.f32 %v345, 0.0
      %v354 = vmul.f32 %v350, 1.442695
      %v355 = vpow.pop %v354
      %v356 = vmul.f32 %v351, 1.442695
      %v357 = vpow.pop %v356
      %v358 = vmul.f32 %v352, 1.442695
      %v359 = vpow.pop %v358
      %v360 = vmul.f32 %v353, 1.442695
      %v361 = vpow.pop %v360
      %v362 = vsub.f32 %v355, 1.0
      %v363 = vsub.f32 %v357, 1.0
      %v364 = vsub.f32 %v359, 1.0
      %v365 = vsub.f32 %v361, 1.0
      %v366 = vsel %vm346, %v342, %v362
      %v367 = vsel %vm347, %v343, %v363
      %v368 = vsel %vm348, %v344, %v364
      %v369 = vsel %vm349, %v345, %v365
      %370 = vst [vmem:[#allocation5] sm:$0xff] %v366
      %371 = vst [vmem:[#allocation5 + $0x8] sm:$0xff] %v367
      %372 = vst [vmem:[#allocation5 + $0x10] sm:$0xff] %v368
      %373 = vst [vmem:[#allocation5 + $0x18] sm:$0xff] %v369
    $region25: #{tpu_custom_call.1} parent=1 // pred_fallthru
      _
    // Predicated region
    $region26: #{tpu_custom_call.1} parent=1 // pred_check
      _
    $region27: #{tpu_custom_call.1} parent=1 // pred_check_branch
      %375 = sbr.rel (0) target = $region29
    $region28: #{tpu_custom_call.1} parent=1 // pred_region
      %s377 = ssub.s32 512, 512
      %378 = vsyncadd [#allocation6], %s377
      %s379 = sshll.u32 [#allocation5], 4
      %s380 = int_to_ptr.vmem [resolvable:$true] %s379
      %385 = dma.vmem_to_hbm [thread:$0]  %s380, 512, %s4, [#allocation6], 128, 128, 8
    $region29: #{tpu_custom_call.1} parent=1 // pred_fallthru
      _
    // Predicated region
    $region30: #{tpu_custom_call.1} parent=1 // pred_check
      _
    $region31: #{tpu_custom_call.1} parent=1 // pred_check_branch
      %387 = sbr.rel (0) target = $region33
    $region32: #{tpu_custom_call.1} parent=1 // pred_region
      %388 = dma.done [#allocation6], 512
    $region33: #{tpu_custom_call.1} parent=1 // pred_fallthru
      _
    %389 = vsyncpa [#allocation6], 1

</llo_original>
